<compile_context>
chip_gen: v7x
topology: tpu7x:2x2x1
jax: 0.10.0
libtpu: 0.0.40
codegen_flags: <defaults>
</compile_context>

<pallas_src>
import functools

import jax
import jax.numpy as jnp
from jax.experimental import pallas as pl
from jax.experimental.pallas import tpu as pltpu

SOFTSHRINK_LAMBDA = 0.5  # PyTorch F.softshrink default lambd


def _round_up(x, m):
    return (x + m - 1) // m * m


def _cdiv(a, b):
    return (a + b - 1) // b


def _mlp_kernel(*refs, use_dropout, keep_threshold, dropout_scale):
    """One (batch-tile, hidden-tile) step of Linear1 -> Softshrink -> Dropout
    -> Linear2, with the hidden axis as the accumulated contraction axis."""
    if use_dropout:
        bits_ref, x_ref, w1_ref, b1_ref, w2_ref, b2_ref, o_ref, acc_ref = refs
    else:
        x_ref, w1_ref, b1_ref, w2_ref, b2_ref, o_ref, acc_ref = refs

    j = pl.program_id(1)

    @pl.when(j == 0)
    def _():
        acc_ref[...] = jnp.zeros_like(acc_ref)

    # --- Linear1 (partial): x @ W1[:, j-tile] + b1[j-tile]  (bf16 MXU, f32 acc)
    h = jnp.dot(x_ref[...], w1_ref[...], preferred_element_type=jnp.float32)
    h = h + b1_ref[...]                       # (1, block_h) broadcasts over rows

    # --- Softshrink(lambda): h - clip(h, -lam, lam)  (exact, 3 VALU ops/elem)
    lam = jnp.float32(SOFTSHRINK_LAMBDA)
    h = h - jnp.clip(h, -lam, lam)

    # --- Dropout keep mask (training only): pure integer compare on int8 bits
    if use_dropout:
        keep = bits_ref[...].astype(jnp.int32) >= keep_threshold
        h = jnp.where(keep, h, jnp.float32(0.0))

    # --- Linear2 (partial): accumulate h_tile @ W2[j-tile, :] into f32 scratch
    acc_ref[...] += jnp.dot(h.astype(w2_ref.dtype), w2_ref[...],
                            preferred_element_type=jnp.float32)

    @pl.when(j == pl.num_programs(1) - 1)
    def _():
        y = acc_ref[...]
        if use_dropout:
            # 1/(1-p) is linear through W2 -> apply once on the (B, N) tensor.
            y = y * jnp.float32(dropout_scale)
        y = y + b2_ref[...]
        o_ref[...] = y.astype(o_ref.dtype)


def mlp_forward(x, w1, b1, w2, b2, *, dropout_p=0.5, training=False, seed=0,
                matmul_dtype=jnp.bfloat16, out_dtype=jnp.float32,
                lane_align=256, max_block_b=512):
    """Pallas forward for MyModule.

    x:  (B, input_size) f32
    w1: (input_size, hidden_size) f32   b1: (1, hidden_size) f32
    w2: (hidden_size, output_size) f32  b2: (1, output_size) f32
    (Weights stored transposed vs. PyTorch so the kernel computes x @ W.)
    NOTE: thread a fresh `seed` per training step for independent masks.
    """
    batch, in_size = x.shape
    hidden = w1.shape[1]
    out_size = w2.shape[1]

    use_dropout = bool(training) and dropout_p > 0.0
    if training and dropout_p >= 1.0:
        # Everything dropped -> output is just the Linear2 bias.
        return jnp.broadcast_to(b2.astype(out_dtype), (batch, out_size))

    # ---- lane-dense, 256-aligned padding of the lane dims ------------------
    K = _round_up(in_size, lane_align)
    H = _round_up(hidden, lane_align)
    N = _round_up(out_size, lane_align)
    # hidden-tile size: 512 when it divides H, else the 256 alignment itself.
    block_h = 512 if H % 512 == 0 else lane_align

    # ---- batch tiling: big tiles, minimal padding, >=2 steps for megacore --
    B = _round_up(batch, 8)
    nt = _cdiv(B, max_block_b)
    if nt == 1 and B >= 16:
        nt = 2                      # let "parallel" shard across v7x's 2 TCs
    block_b = _round_up(_cdiv(B, nt), 8)
    B = block_b * nt                # at most 7 padded rows beyond round_up(batch,8)

    def pad2(a, rows, cols, dtype):
        a = a.astype(dtype)
        pr, pc = rows - a.shape[0], cols - a.shape[1]
        if pr == 0 and pc == 0:
            return a
        return jnp.pad(a, ((0, pr), (0, pc)))

    x_p = pad2(x, B, K, matmul_dtype)
    w1_p = pad2(w1, K, H, matmul_dtype)
    b1_p = pad2(b1, 1, H, jnp.float32)
    w2_p = pad2(w2, H, N, matmul_dtype)
    b2_p = pad2(b2, 1, N, jnp.float32)

    grid = (B // block_b, H // block_h)

    in_specs = []
    args = []
    keep_threshold = 0
    if use_dropout:
        # int8 random bytes: 4x less HBM traffic than the old uint32 stream.
        # keep iff bits >= t with t = 256*p - 128 (uniform over [-128,127]).
        keep_threshold = max(-128, min(127, int(round(256.0 * dropout_p)) - 128))
        bits = jax.random.bits(jax.random.PRNGKey(seed), (B, H), dtype=jnp.uint8)
        bits = jax.lax.bitcast_convert_type(bits, jnp.int8)
        in_specs.append(pl.BlockSpec((block_b, block_h), lambda i, j: (i, j)))
        args.append(bits)

    in_specs += [
        pl.BlockSpec((block_b, K), lambda i, j: (i, 0)),   # x (reused over j)
        pl.BlockSpec((K, block_h), lambda i, j: (0, j)),   # W1 column tile
        pl.BlockSpec((1, block_h), lambda i, j: (0, j)),   # b1 tile
        pl.BlockSpec((block_h, N), lambda i, j: (j, 0)),   # W2 row tile
        pl.BlockSpec((1, N), lambda i, j: (0, 0)),         # b2 (constant, tiny)
    ]
    args += [x_p, w1_p, b1_p, w2_p, b2_p]

    out_specs = pl.BlockSpec((block_b, N), lambda i, j: (i, 0))

    # ---- VMEM budget (double-buffered inputs/outputs + f32 accumulator) ----
    mm = jnp.dtype(matmul_dtype).itemsize
    ob = jnp.dtype(out_dtype).itemsize
    vmem_est = (2 * block_b * K * mm          # x tile
                + 2 * K * block_h * mm        # W1 tile
                + 2 * block_h * N * mm        # W2 tile
                + 2 * 8 * block_h * 4         # b1 tile (sublane-padded)
                + 2 * 8 * N * 4               # b2
                + 2 * block_b * N * ob        # output tile
                + block_b * N * 4)            # f32 accumulator scratch
    if use_dropout:
        vmem_est += 2 * block_b * block_h     # int8 bits tile
    vmem_limit = int(min(96 * (1 << 20), max(32 * (1 << 20), 1.5 * vmem_est)))

    flops = 2 * B * (K * H + H * N)
    bytes_accessed = (x_p.size * mm + w1_p.size * mm + w2_p.size * mm
                      + b1_p.size * 4 + b2_p.size * 4 + B * N * ob
                      + (B * H if use_dropout else 0))
    cost = pl.CostEstimate(flops=flops, transcendentals=0,
                           bytes_accessed=bytes_accessed)

    kernel = functools.partial(
        _mlp_kernel, use_dropout=use_dropout, keep_threshold=keep_threshold,
        dropout_scale=(1.0 / (1.0 - dropout_p)) if use_dropout else 1.0)

    y_p = pl.pallas_call(
        kernel,
        out_shape=jax.ShapeDtypeStruct((B, N), out_dtype),
        grid=grid,
        in_specs=in_specs,
        out_specs=out_specs,
        scratch_shapes=[pltpu.VMEM((block_b, N), jnp.float32)],
        compiler_params=pltpu.CompilerParams(
            dimension_semantics=("parallel", "arbitrary"),
            vmem_limit_bytes=vmem_limit),
        cost_estimate=cost,
    )(*args)

    return y_p[:batch, :out_size]


def _init_linear(key, fan_in, fan_out):
    """PyTorch-style uniform(-1/sqrt(fan_in), 1/sqrt(fan_in)) init.
    Returns W (fan_in, fan_out) (transposed for x @ W) and bias (1, fan_out)."""
    kw, kb = jax.random.split(key)
    bound = 1.0 / jnp.sqrt(jnp.float32(fan_in))
    w = jax.random.uniform(kw, (fan_in, fan_out), jnp.float32, -bound, bound)
    b = jax.random.uniform(kb, (1, fan_out), jnp.float32, -bound, bound)
    return w, b


def _reference_forward(x, w1, b1, w2, b2, matmul_dtype=jnp.bfloat16):
    """Pure-JAX reference (eval mode) with the same bf16-operand matmuls."""
    lam = SOFTSHRINK_LAMBDA
    h = jnp.dot(x.astype(matmul_dtype), w1.astype(matmul_dtype),
                preferred_element_type=jnp.float32) + b1
    h = h - jnp.clip(h, -lam, lam)
    return jnp.dot(h.astype(matmul_dtype), w2.astype(matmul_dtype),
                   preferred_element_type=jnp.float32) + b2


def _reference_forward_f32(x, w1, b1, w2, b2):
    lam = SOFTSHRINK_LAMBDA
    h = x @ w1 + b1
    h = h - jnp.clip(h, -lam, lam)
    return h @ w2 + b2


if __name__ == "__main__":
    # ---- Test 1: module-sized shapes (single tile per grid axis) -----------
    batch, input_size, hidden_size, output_size = 8, 32, 64, 32
    kx, k1, k2 = jax.random.split(jax.random.PRNGKey(0), 3)
    x = jax.random.normal(kx, (batch, input_size), jnp.float32)
    w1, b1 = _init_linear(k1, input_size, hidden_size)
    w2, b2 = _init_linear(k2, hidden_size, output_size)

    out = jax.block_until_ready(
        mlp_forward(x, w1, b1, w2, b2, dropout_p=0.5, training=False))
    ref16 = _reference_forward(x, w1, b1, w2, b2)
    ref32 = _reference_forward_f32(x, w1, b1, w2, b2)
    assert out.shape == (batch, output_size)
    assert jnp.allclose(out, ref16, atol=1e-2, rtol=1e-2), "mismatch vs bf16 ref"
    assert jnp.allclose(out, ref32, atol=1e-1, rtol=1e-1), "mismatch vs f32 ref"

    # Training path (dropout active, host-generated int8 bits).
    out_tr = jax.block_until_ready(
        mlp_forward(x, w1, b1, w2, b2, dropout_p=0.5, training=True, seed=1234))
    assert out_tr.shape == (batch, output_size)
    assert bool(jnp.all(jnp.isfinite(out_tr)))

    # ---- Test 2: multi-tile grid (2 batch tiles x 3 hidden tiles), eval ----
    batch2, in2, hid2, out2 = 48, 96, 768, 80
    kx2, k3, k4 = jax.random.split(jax.random.PRNGKey(1), 3)
    x2 = jax.random.normal(kx2, (batch2, in2), jnp.float32)
    w1b, b1b = _init_linear(k3, in2, hid2)
    w2b, b2b = _init_linear(k4, hid2, out2)
    out_big = jax.block_until_ready(
        mlp_forward(x2, w1b, b1b, w2b, b2b, dropout_p=0.5, training=False))
    ref16b = _reference_forward(x2, w1b, b1b, w2b, b2b)
    assert out_big.shape == (batch2, out2)
    assert jnp.allclose(out_big, ref16b, atol=2e-2, rtol=2e-2), \
        "mismatch vs bf16 ref (multi-tile)"

    print("KERNEL_OK")
</pallas_src>

<mosaic_0001>
module attributes {stable_mosaic.version = 11 : i64} {
  func.func @_mlp_kernel(%arg0: i32, %arg1: i32, %arg2: memref<8x256xbf16, #tpu.memory_space<vmem>>, %arg3: memref<256x256xbf16, #tpu.memory_space<vmem>>, %arg4: memref<1x256xf32, #tpu.memory_space<vmem>>, %arg5: memref<256x256xbf16, #tpu.memory_space<vmem>>, %arg6: memref<1x256xf32, #tpu.memory_space<vmem>>, %arg7: memref<8x256xf32, #tpu.memory_space<vmem>>, %arg8: memref<8x256xf32, #tpu.memory_space<vmem>>) attributes {dimension_semantics = [#tpu.dimension_semantics<parallel>, #tpu.dimension_semantics<arbitrary>], iteration_bounds = array<i64: 1, 1>, scalar_prefetch = 0 : i64, scratch_operands = 1 : i64, tpu.core_type = #tpu.core_type<tc>, window_params = [{transform_indices = @transform_0, window_bounds = array<i64: 8, 256>}, {transform_indices = @transform_1, window_bounds = array<i64: 256, 256>}, {transform_indices = @transform_2, window_bounds = array<i64: 1, 256>}, {transform_indices = @transform_3, window_bounds = array<i64: 256, 256>}, {pipeline_mode = #tpu.pipeline_mode<synchronous>, transform_indices = @transform_4, window_bounds = array<i64: 1, 256>}, {transform_indices = @transform_5, window_bounds = array<i64: 8, 256>}]} {
    %c0_i32 = arith.constant 0 : i32
    %0 = arith.cmpi eq, %arg1, %c0_i32 : i32
    %1 = arith.extui %0 : i1 to i32
    %c0_i32_0 = arith.constant 0 : i32
    %2 = arith.cmpi ne, %1, %c0_i32_0 : i32
    scf.if %2 {
      %cst_18 = arith.constant 0.000000e+00 : f32
      %24 = vector.broadcast %cst_18 : f32 to vector<8x256xf32>
      %c0_19 = arith.constant 0 : index
      %c0_20 = arith.constant 0 : index
      %25 = vector.load %arg8[%c0_19, %c0_20] : memref<8x256xf32, #tpu.memory_space<vmem>>, vector<8x256xf32>
      tpu.vector_store %arg8[%c0_19, %c0_20], %24 {strides = array<i32>} : memref<8x256xf32, #tpu.memory_space<vmem>>, vector<8x256xf32>,
    } else {
    }
    %c0 = arith.constant 0 : index
    %c0_1 = arith.constant 0 : index
    %3 = vector.load %arg2[%c0, %c0_1] : memref<8x256xbf16, #tpu.memory_space<vmem>>, vector<8x256xbf16>
    %c0_2 = arith.constant 0 : index
    %c0_3 = arith.constant 0 : index
    %4 = vector.load %arg3[%c0_2, %c0_3] : memref<256x256xbf16, #tpu.memory_space<vmem>>, vector<256x256xbf16>
    %cst = arith.constant dense<0.000000e+00> : vector<8x256xf32>
    %5 = tpu.matmul %3, %4, %cst {dimension_numbers = #tpu.dot_dimension_numbers<[1], [0], [0], [1], [0, 0, 1, 1], [], []>} : vector<8x256xbf16>, vector<256x256xbf16>, vector<8x256xf32> -> vector<8x256xf32>
    %c0_4 = arith.constant 0 : index
    %c0_5 = arith.constant 0 : index
    %6 = vector.load %arg4[%c0_4, %c0_5] : memref<1x256xf32, #tpu.memory_space<vmem>>, vector<1x256xf32>
    %7 = vector.broadcast %6 : vector<1x256xf32> to vector<8x256xf32>
    %8 = arith.addf %5, %7 : vector<8x256xf32>
    %cst_6 = arith.constant 0.000000e+00 : f32
    %cst_7 = arith.constant 5.000000e-01 : f32
    %9 = arith.subf %cst_6, %cst_7 : f32
    %cst_8 = arith.constant 5.000000e-01 : f32
    %10 = vector.broadcast %9 : f32 to vector<8x256xf32>
    %11 = arith.maximumf %10, %8 : vector<8x256xf32>
    %12 = vector.broadcast %cst_8 : f32 to vector<8x256xf32>
    %13 = arith.minimumf %12, %11 : vector<8x256xf32>
    %14 = arith.subf %8, %13 : vector<8x256xf32>
    %c0_9 = arith.constant 0 : index
    %c0_10 = arith.constant 0 : index
    %15 = vector.load %arg8[%c0_9, %c0_10] : memref<8x256xf32, #tpu.memory_space<vmem>>, vector<8x256xf32>
    %16 = arith.truncf %14 : vector<8x256xf32> to vector<8x256xbf16>
    %c0_11 = arith.constant 0 : index
    %c0_12 = arith.constant 0 : index
    %17 = vector.load %arg5[%c0_11, %c0_12] : memref<256x256xbf16, #tpu.memory_space<vmem>>, vector<256x256xbf16>
    %cst_13 = arith.constant dense<0.000000e+00> : vector<8x256xf32>
    %18 = tpu.matmul %16, %17, %cst_13 {dimension_numbers = #tpu.dot_dimension_numbers<[1], [0], [0], [1], [0, 0, 1, 1], [], []>} : vector<8x256xbf16>, vector<256x256xbf16>, vector<8x256xf32> -> vector<8x256xf32>
    %19 = arith.addf %15, %18 : vector<8x256xf32>
    %c0_14 = arith.constant 0 : index
    %c0_15 = arith.constant 0 : index
    %20 = vector.load %arg8[%c0_14, %c0_15] : memref<8x256xf32, #tpu.memory_space<vmem>>, vector<8x256xf32>
    tpu.vector_store %arg8[%c0_14, %c0_15], %19 {strides = array<i32>} : memref<8x256xf32, #tpu.memory_space<vmem>>, vector<8x256xf32>,
    %c0_i32_16 = arith.constant 0 : i32
    %21 = arith.cmpi eq, %arg1, %c0_i32_16 : i32
    %22 = arith.extui %21 : i1 to i32
    %c0_i32_17 = arith.constant 0 : i32
    %23 = arith.cmpi ne, %22, %c0_i32_17 : i32
    scf.if %23 {
      %c0_18 = arith.constant 0 : index
      %c0_19 = arith.constant 0 : index
      %24 = vector.load %arg8[%c0_18, %c0_19] : memref<8x256xf32, #tpu.memory_space<vmem>>, vector<8x256xf32>
      %c0_20 = arith.constant 0 : index
      %c0_21 = arith.constant 0 : index
      %25 = vector.load %arg6[%c0_20, %c0_21] : memref<1x256xf32, #tpu.memory_space<vmem>>, vector<1x256xf32>
      %26 = vector.broadcast %25 : vector<1x256xf32> to vector<8x256xf32>
      %27 = arith.addf %24, %26 : vector<8x256xf32>
      %c0_22 = arith.constant 0 : index
      %c0_23 = arith.constant 0 : index
      %28 = vector.load %arg7[%c0_22, %c0_23] : memref<8x256xf32, #tpu.memory_space<vmem>>, vector<8x256xf32>
      tpu.vector_store %arg7[%c0_22, %c0_23], %27 {strides = array<i32>} : memref<8x256xf32, #tpu.memory_space<vmem>>, vector<8x256xf32>,
    } else {
    }
    return
  }
  func.func @transform_0(%arg0: i32, %arg1: i32) -> (i32, i32) {
    %c0_i32 = arith.constant 0 : i32
    %c0_i32_0 = arith.constant 0 : i32
    return %arg0, %c0_i32 : i32, i32
  }
  func.func @transform_1(%arg0: i32, %arg1: i32) -> (i32, i32) {
    %c0_i32 = arith.constant 0 : i32
    %c0_i32_0 = arith.constant 0 : i32
    return %c0_i32, %arg1 : i32, i32
  }
  func.func @transform_2(%arg0: i32, %arg1: i32) -> (i32, i32) {
    %c0_i32 = arith.constant 0 : i32
    %c0_i32_0 = arith.constant 0 : i32
    return %c0_i32, %arg1 : i32, i32
  }
  func.func @transform_3(%arg0: i32, %arg1: i32) -> (i32, i32) {
    %c0_i32 = arith.constant 0 : i32
    %c0_i32_0 = arith.constant 0 : i32
    return %arg1, %c0_i32 : i32, i32
  }
  func.func @transform_4(%arg0: i32, %arg1: i32) -> (i32, i32) {
    %c0_i32 = arith.constant 0 : i32
    %c0_i32_0 = arith.constant 0 : i32
    %c0_i32_1 = arith.constant 0 : i32
    return %c0_i32, %c0_i32_0 : i32, i32
  }
  func.func @transform_5(%arg0: i32, %arg1: i32) -> (i32, i32) {
    %c0_i32 = arith.constant 0 : i32
    %c0_i32_0 = arith.constant 0 : i32
    return %arg0, %c0_i32 : i32, i32
  }
}

</mosaic_0001>

<llo_original>
// kernel: tpu_custom_call.1
$region0: #{tpu_custom_call.1}
  #allocation0 [shape = 'u32[]', space=smem, size = 0x4, offset = 0x4, fixed_abs, tag = 'smem constant byte address 0x4 - core index']
  #allocation1 [shape = 'u32[144,128]{1,0:T(1,128)}', space=vmem, size = 0x12000, scoped, tag = 'internal scratch']
  #allocation2 [shape = 'f32[8,256]{1,0:T(8,128)}', space=vmem, size = 0x2000, scoped, tag = 'scratch operand']
  %s0 = inlined_call_operand.hbm [shape: bf16[8,256], index: 0, kind: input, shape index: {}]
  %s1 = inlined_call_operand.hbm [shape: bf16[256,256], index: 1, kind: input, shape index: {}]
  %s2 = inlined_call_operand.vmem [shape: f32[1,256], index: 2, kind: input, shape index: {}]
  %s3 = inlined_call_operand.hbm [shape: bf16[256,256], index: 3, kind: input, shape index: {}]
  %s4 = inlined_call_operand.vmem [shape: f32[1,256], index: 4, kind: input, shape index: {}]
  %s5 = inlined_call_operand.hbm [shape: f32[8,256], index: 5, kind: output, shape index: {}]
  %s6 = sld [smem:[#allocation0]]
  $region50: #{tpu_custom_call.1} parent=0
    _
  %s8 = ssub.s32 1, %s6
  %s9 = scalar_select 0, %s8, %s6
  $region1: #{tpu_custom_call.1} parent=0
    #allocation3 [shape = 'u8[4096]{0}', space=vmem, size = 0x1000, scoped, tag = 'input window, operand 0, single buffered']
    #allocation4 [shape = 's32[1]{0}', space=sflag, size = 0x4, scoped, tag = 'scoped memory for tpu_custom_call.1']
    #allocation5 [shape = 's32[1]{0}', space=sflag, size = 0x4, scoped, tag = 'scoped memory for tpu_custom_call.1']
    #allocation6 [shape = 'u8[131072]{0}', space=vmem, size = 0x20000, scoped, tag = 'input window, operand 1, single buffered']
    #allocation7 [shape = 's32[1]{0}', space=sflag, size = 0x4, scoped, tag = 'scoped memory for tpu_custom_call.1']
    #allocation8 [shape = 'u8[131072]{0}', space=vmem, size = 0x20000, scoped, tag = 'input window, operand 3, single buffered']
    #allocation9 [shape = 'u8[8192]{0}', space=vmem, size = 0x2000, scoped, tag = 'output window, operand 0, single buffered']
    %10 = vsyncpa [#allocation4], 0
    %11 = vsyncpa [#allocation7], 0
    %12 = vsyncpa [#allocation5], 0
    // Predicated region
    $region2: #{tpu_custom_call.1} parent=1 // pred_check
      _
    $region3: #{tpu_custom_call.1} parent=1 // pred_check_branch
      %14 = sbr.rel (0) target = $region5
    $region4: #{tpu_custom_call.1} parent=1 // pred_region
      %s16 = ssub.s32 128, 128
      %17 = vsyncadd [#allocation4], %s16
      %s19 = sshll.u32 [#allocation3], 4
      %s20 = int_to_ptr.vmem [resolvable:$true] %s19
      %22 = dma.hbm_to_vmem [thread:$0]  %s0, 128, %s20, [#allocation4]
    $region5: #{tpu_custom_call.1} parent=1 // pred_fallthru
      _
    // Predicated region
    $region6: #{tpu_custom_call.1} parent=1 // pred_check
      _
    $region7: #{tpu_custom_call.1} parent=1 // pred_check_branch
      %24 = sbr.rel (0) target = $region9
    $region8: #{tpu_custom_call.1} parent=1 // pred_region
      %s26 = ssub.s32 4096, 4096
      %27 = vsyncadd [#allocation7], %s26
      %s28 = sshll.u32 [#allocation6], 4
      %s29 = int_to_ptr.vmem [resolvable:$true] %s28
      %34 = dma.hbm_to_vmem [thread:$0]  %s1, 4096, %s29, [#allocation7], 128, 128, 8
    $region9: #{tpu_custom_call.1} parent=1 // pred_fallthru
      _
    // Predicated region
    $region10: #{tpu_custom_call.1} parent=1 // pred_check
      _
    $region11: #{tpu_custom_call.1} parent=1 // pred_check_branch
      %36 = sbr.rel (0) target = $region13
    $region12: #{tpu_custom_call.1} parent=1 // pred_region
      _
    $region13: #{tpu_custom_call.1} parent=1 // pred_fallthru
      _
    // Predicated region
    $region14: #{tpu_custom_call.1} parent=1 // pred_check
      _
    $region15: #{tpu_custom_call.1} parent=1 // pred_check_branch
      %38 = sbr.rel (0) target = $region17
    $region16: #{tpu_custom_call.1} parent=1 // pred_region
      %s40 = ssub.s32 4096, 4096
      %41 = vsyncadd [#allocation7], %s40
      %s42 = sshll.u32 [#allocation8], 4
      %s43 = int_to_ptr.vmem [resolvable:$true] %s42
      %48 = dma.hbm_to_vmem [thread:$0]  %s3, 4096, %s43, [#allocation7], 128, 128, 8
    $region17: #{tpu_custom_call.1} parent=1 // pred_fallthru
      _
    // Predicated region
    $region18: #{tpu_custom_call.1} parent=1 // pred_check
      _
    $region19: #{tpu_custom_call.1} parent=1 // pred_check_branch
      %50 = sbr.rel (0) target = $region21
    $region20: #{tpu_custom_call.1} parent=1 // pred_region
      _
    $region21: #{tpu_custom_call.1} parent=1 // pred_fallthru
      _
    // Predicated region
    $region22: #{tpu_custom_call.1} parent=1 // pred_check
      _
    $region23: #{tpu_custom_call.1} parent=1 // pred_check_branch
      %52 = sbr.rel (0) target = $region25
    $region24: #{tpu_custom_call.1} parent=1 // pred_region
      %53 = dma.done [#allocation4], 128
    $region25: #{tpu_custom_call.1} parent=1 // pred_fallthru
      _
    // Predicated region
    $region26: #{tpu_custom_call.1} parent=1 // pred_check
      _
    $region27: #{tpu_custom_call.1} parent=1 // pred_check_branch
      %55 = sbr.rel (0) target = $region29
    $region28: #{tpu_custom_call.1} parent=1 // pred_region
      %56 = dma.done [#allocation7], 4096
    $region29: #{tpu_custom_call.1} parent=1 // pred_fallthru
      _
    // Predicated region
    $region30: #{tpu_custom_call.1} parent=1 // pred_check
      _
    $region31: #{tpu_custom_call.1} parent=1 // pred_check_branch
      %58 = sbr.rel (0) target = $region33
    $region32: #{tpu_custom_call.1} parent=1 // pred_region
      %59 = dma.done [#allocation7], 4096
    $region33: #{tpu_custom_call.1} parent=1 // pred_fallthru
      _
    %p60 = scmp.eq.s32.totalorder 0, 0
    // Predicated region
    $region34: #{tpu_custom_call.1} parent=1 // pred_check
      %p61 = pneg %p60
    $region35: #{tpu_custom_call.1} parent=1 // pred_check_branch
      %63 = sbr.rel (%p61) target = $region37
    $region36: #{tpu_custom_call.1} parent=1 // pred_region
      %64 = vst [vmem:[#allocation2] sm:$0xff] 0.0
      %65 = vst [vmem:[#allocation2 + $0x8] sm:$0xff] 0.0
    $region37: #{tpu_custom_call.1} parent=1 // pred_fallthru
      _
    %v66 = vld [vmem:[#allocation3] sm:$0xff]
    %v67 = vld [vmem:[#allocation6] sm:$0xff]
    %v68 = vld [vmem:[#allocation6 + $0x8] sm:$0xff]
    %v69 = vld [vmem:[#allocation6 + $0x10] sm:$0xff]
    %v70 = vld [vmem:[#allocation6 + $0x18] sm:$0xff]
    %v71 = vld [vmem:[#allocation6 + $0x20] sm:$0xff]
    %v72 = vld [vmem:[#allocation6 + $0x28] sm:$0xff]
    %v73 = vld [vmem:[#allocation6 + $0x30] sm:$0xff]
    %v74 = vld [vmem:[#allocation6 + $0x38] sm:$0xff]
    %v75 = vld [vmem:[#allocation6 + $0x40] sm:$0xff]
    %v76 = vld [vmem:[#allocation6 + $0x48] sm:$0xff]
    %v77 = vld [vmem:[#allocation6 + $0x50] sm:$0xff]
    %v78 = vld [vmem:[#allocation6 + $0x58] sm:$0xff]
    %v79 = vld [vmem:[#allocation6 + $0x60] sm:$0xff]
    %v80 = vld [vmem:[#allocation6 + $0x68] sm:$0xff]
    %v81 = vld [vmem:[#allocation6 + $0x70] sm:$0xff]
    %v82 = vld [vmem:[#allocation6 + $0x78] sm:$0xff]
    %v83 = vld [vmem:[#allocation6 + $0x80] sm:$0xff]
    %v84 = vld [vmem:[#allocation6 + $0x88] sm:$0xff]
    %v85 = vld [vmem:[#allocation6 + $0x90] sm:$0xff]
    %v86 = vld [vmem:[#allocation6 + $0x98] sm:$0xff]
    %v87 = vld [vmem:[#allocation6 + $0xa0] sm:$0xff]
    %v88 = vld [vmem:[#allocation6 + $0xa8] sm:$0xff]
    %v89 = vld [vmem:[#allocation6 + $0xb0] sm:$0xff]
    %v90 = vld [vmem:[#allocation6 + $0xb8] sm:$0xff]
    %v91 = vld [vmem:[#allocation6 + $0xc0] sm:$0xff]
    %v92 = vld [vmem:[#allocation6 + $0xc8] sm:$0xff]
    %v93 = vld [vmem:[#allocation6 + $0xd0] sm:$0xff]
    %v94 = vld [vmem:[#allocation6 + $0xd8] sm:$0xff]
    %v95 = vld [vmem:[#allocation6 + $0xe0] sm:$0xff]
    %v96 = vld [vmem:[#allocation6 + $0xe8] sm:$0xff]
    %v97 = vld [vmem:[#allocation6 + $0xf0] sm:$0xff]
    %v98 = vld [vmem:[#allocation6 + $0xf8] sm:$0xff]
    %v99 = vld [vmem:[%s2] sm:$0x3]
    %v101 = vlaneseq
    %v102 = vshrl.u32 %v101, 7
    %v103 = vsub.s32 0, %v102
    %v104 = vrot.slane %v99, %v103
    %v105 = vlaneseq
    %v106 = vshrl.u32 %v105, 7
    %v107 = vsub.s32 1, %v106
    %v108 = vrot.slane %v99, %v107
    %v112 = vunpack.c.l.b16 %v66
    %v113 = vunpack.c.h.b16 %v66
    %v114 = vpack.c.b16 %v112, %v112
    %v115 = vpack.c.b16 %v113, %v113
    %v150 = vunpack.c.l.b16 %v67
    %v151 = vunpack.c.h.b16 %v67
    %v152 = vunpack.c.l.b16 %v68
    %v153 = vunpack.c.h.b16 %v68
    %v154 = vunpack.c.l.b16 %v69
    %v155 = vunpack.c.h.b16 %v69
    %v156 = vunpack.c.l.b16 %v70
    %v157 = vunpack.c.h.b16 %v70
    %v158 = vunpack.c.l.b16 %v71
    %v159 = vunpack.c.h.b16 %v71
    %v160 = vunpack.c.l.b16 %v72
    %v161 = vunpack.c.h.b16 %v72
    %v162 = vunpack.c.l.b16 %v73
    %v163 = vunpack.c.h.b16 %v73
    %v164 = vunpack.c.l.b16 %v74
    %v165 = vunpack.c.h.b16 %v74
    %v166 = vunpack.c.l.b16 %v75
    %v167 = vunpack.c.h.b16 %v75
    %v168 = vunpack.c.l.b16 %v76
    %v169 = vunpack.c.h.b16 %v76
    %v170 = vunpack.c.l.b16 %v77
    %v171 = vunpack.c.h.b16 %v77
    %v172 = vunpack.c.l.b16 %v78
    %v173 = vunpack.c.h.b16 %v78
    %v174 = vunpack.c.l.b16 %v79
    %v175 = vunpack.c.h.b16 %v79
    %v176 = vunpack.c.l.b16 %v80
    %v177 = vunpack.c.h.b16 %v80
    %v178 = vunpack.c.l.b16 %v81
    %v179 = vunpack.c.h.b16 %v81
    %v180 = vunpack.c.l.b16 %v82
    %v181 = vunpack.c.h.b16 %v82
    %v182 = vunpack.c.l.b16 %v83
    %v183 = vunpack.c.h.b16 %v83
    %v184 = vunpack.c.l.b16 %v84
    %v185 = vunpack.c.h.b16 %v84
    %v186 = vunpack.c.l.b16 %v85
    %v187 = vunpack.c.h.b16 %v85
    %v188 = vunpack.c.l.b16 %v86
    %v189 = vunpack.c.h.b16 %v86
    %v190 = vunpack.c.l.b16 %v87
    %v191 = vunpack.c.h.b16 %v87
    %v192 = vunpack.c.l.b16 %v88
    %v193 = vunpack.c.h.b16 %v88
    %v194 = vunpack.c.l.b16 %v89
    %v195 = vunpack.c.h.b16 %v89
    %v196 = vunpack.c.l.b16 %v90
    %v197 = vunpack.c.h.b16 %v90
    %v198 = vunpack.c.l.b16 %v91
    %v199 = vunpack.c.h.b16 %v91
    %v200 = vunpack.c.l.b16 %v92
    %v201 = vunpack.c.h.b16 %v92
    %v202 = vunpack.c.l.b16 %v93
    %v203 = vunpack.c.h.b16 %v93
    %v204 = vunpack.c.l.b16 %v94
    %v205 = vunpack.c.h.b16 %v94
    %v206 = vunpack.c.l.b16 %v95
    %v207 = vunpack.c.h.b16 %v95
    %v208 = vunpack.c.l.b16 %v96
    %v209 = vunpack.c.h.b16 %v96
    %v210 = vunpack.c.l.b16 %v97
    %v211 = vunpack.c.h.b16 %v97
    %v212 = vunpack.c.l.b16 %v98
    %v213 = vunpack.c.h.b16 %v98
    %v214 = vpack.c.b16 %v152, %v150
    %v215 = vpack.c.b16 %v153, %v151
    %v216 = vpack.c.b16 %v156, %v154
    %v217 = vpack.c.b16 %v157, %v155
    %v218 = vpack.c.b16 %v160, %v158
    %v219 = vpack.c.b16 %v161, %v159
    %v220 = vpack.c.b16 %v164, %v162
    %v221 = vpack.c.b16 %v165, %v163
    %v222 = vpack.c.b16 %v168, %v166
    %v223 = vpack.c.b16 %v169, %v167
    %v224 = vpack.c.b16 %v172, %v170
    %v225 = vpack.c.b16 %v173, %v171
    %v226 = vpack.c.b16 %v176, %v174
    %v227 = vpack.c.b16 %v177, %v175
    %v228 = vpack.c.b16 %v180, %v178
    %v229 = vpack.c.b16 %v181, %v179
    %v230 = vpack.c.b16 %v184, %v182
    %v231 = vpack.c.b16 %v185, %v183
    %v232 = vpack.c.b16 %v188, %v186
    %v233 = vpack.c.b16 %v189, %v187
    %v234 = vpack.c.b16 %v192, %v190
    %v235 = vpack.c.b16 %v193, %v191
    %v236 = vpack.c.b16 %v196, %v194
    %v237 = vpack.c.b16 %v197, %v195
    %v238 = vpack.c.b16 %v200, %v198
    %v239 = vpack.c.b16 %v201, %v199
    %v240 = vpack.c.b16 %v204, %v202
    %v241 = vpack.c.b16 %v205, %v203
    %v242 = vpack.c.b16 %v208, %v206
    %v243 = vpack.c.b16 %v209, %v207
    %v244 = vpack.c.b16 %v212, %v210
    %v245 = vpack.c.b16 %v213, %v211
    %278 = vmatprep.subr.bf16.mxu0 %v215
    %279 = vmatpush1.bf16.msra.mxu0 %v214
    %280 = vmatprep.subr.bf16.mxu0 %v217
    %281 = vmatpush1.bf16.msra.mxu0 %v216
    %282 = vmatprep.subr.bf16.mxu0 %v219
    %283 = vmatpush1.bf16.msra.mxu0 %v218
    %284 = vmatprep.subr.bf16.mxu0 %v221
    %285 = vmatpush1.bf16.msra.mxu0 %v220
    %286 = vmatprep.subr.bf16.mxu0 %v223
    %287 = vmatpush1.bf16.msra.mxu0 %v222
    %288 = vmatprep.subr.bf16.mxu0 %v225
    %289 = vmatpush1.bf16.msra.mxu0 %v224
    %290 = vmatprep.subr.bf16.mxu0 %v227
    %291 = vmatpush1.bf16.msra.mxu0 %v226
    %292 = vmatprep.subr.bf16.mxu0 %v229
    %293 = vmatpush1.bf16.msra.mxu0 %v228
    %294 = vmatprep.subr.bf16.mxu0 %v231
    %295 = vmatpush1.bf16.msra.mxu0 %v230
    %296 = vmatprep.subr.bf16.mxu0 %v233
    %297 = vmatpush1.bf16.msra.mxu0 %v232
    %298 = vmatprep.subr.bf16.mxu0 %v235
    %299 = vmatpush1.bf16.msra.mxu0 %v234
    %300 = vmatprep.subr.bf16.mxu0 %v237
    %301 = vmatpush1.bf16.msra.mxu0 %v236
    %302 = vmatprep.subr.bf16.mxu0 %v239
    %303 = vmatpush1.bf16.msra.mxu0 %v238
    %304 = vmatprep.subr.bf16.mxu0 %v241
    %305 = vmatpush1.bf16.msra.mxu0 %v240
    %306 = vmatprep.subr.bf16.mxu0 %v243
    %307 = vmatpush1.bf16.msra.mxu0 %v242
    %308 = vmatprep.subr.bf16.mxu0 %v245
    %309 = vmatpush1.bf16.msra.mxu0 %v244
    %310 = vmatprep.mubr.bf16.mxu0 %v115
    %311 = vmatmul.mubr.bf16.gmra.mrb[0].mxu0 %v114
    %v312 = vpop.f32.mrb[0].mxu0
    %v313 = vadd.f32 %v104, %v312
    %v314 = vpop.f32.mrb[0].mxu0
    %v315 = vadd.f32 %v108, %v314
    %v316 = vpop.f32.mrb[0].mxu0
    %v317 = vpop.f32.mrb[0].mxu0
    %318 = vdwg.mxu0
    %v319 = vmax.f32 %v313, -0.5
    %v320 = vmax.f32 %v315, -0.5
    %v321 = vmin.f32 %v319, 0.5
    %v322 = vmin.f32 %v320, 0.5
    %v323 = vsub.f32 %v313, %v321
    %v324 = vsub.f32 %v315, %v322
    %v325 = vld [vmem:[#allocation2] sm:$0xff]
    %v326 = vld [vmem:[#allocation2 + $0x8] sm:$0xff]
    %v327 = vpack.c.bf16 %v323, %v323
    %v328 = vpack.c.bf16 %v324, %v324
    %v329 = vld [vmem:[#allocation8] sm:$0xff]
    %v330 = vld [vmem:[#allocation8 + $0x8] sm:$0xff]
    %v331 = vld [vmem:[#allocation8 + $0x10] sm:$0xff]
    %v332 = vld [vmem:[#allocation8 + $0x18] sm:$0xff]
    %v333 = vld [vmem:[#allocation8 + $0x20] sm:$0xff]
    %v334 = vld [vmem:[#allocation8 + $0x28] sm:$0xff]
    %v335 = vld [vmem:[#allocation8 + $0x30] sm:$0xff]
    %v336 = vld [vmem:[#allocation8 + $0x38] sm:$0xff]
    %v337 = vld [vmem:[#allocation8 + $0x40] sm:$0xff]
    %v338 = vld [vmem:[#allocation8 + $0x48] sm:$0xff]
    %v339 = vld [vmem:[#allocation8 + $0x50] sm:$0xff]
    %v340 = vld [vmem:[#allocation8 + $0x58] sm:$0xff]
    %v341 = vld [vmem:[#allocation8 + $0x60] sm:$0xff]
    %v342 = vld [vmem:[#allocation8 + $0x68] sm:$0xff]
    %v343 = vld [vmem:[#allocation8 + $0x70] sm:$0xff]
    %v344 = vld [vmem:[#allocation8 + $0x78] sm:$0xff]
    %v345 = vld [vmem:[#allocation8 + $0x80] sm:$0xff]
    %v346 = vld [vmem:[#allocation8 + $0x88] sm:$0xff]
    %v347 = vld [vmem:[#allocation8 + $0x90] sm:$0xff]
    %v348 = vld [vmem:[#allocation8 + $0x98] sm:$0xff]
    %v349 = vld [vmem:[#allocation8 + $0xa0] sm:$0xff]
    %v350 = vld [vmem:[#allocation8 + $0xa8] sm:$0xff]
    %v351 = vld [vmem:[#allocation8 + $0xb0] sm:$0xff]
    %v352 = vld [vmem:[#allocation8 + $0xb8] sm:$0xff]
    %v353 = vld [vmem:[#allocation8 + $0xc0] sm:$0xff]
    %v354 = vld [vmem:[#allocation8 + $0xc8] sm:$0xff]
    %v355 = vld [vmem:[#allocation8 + $0xd0] sm:$0xff]
    %v356 = vld [vmem:[#allocation8 + $0xd8] sm:$0xff]
    %v357 = vld [vmem:[#allocation8 + $0xe0] sm:$0xff]
    %v358 = vld [vmem:[#allocation8 + $0xe8] sm:$0xff]
    %v359 = vld [vmem:[#allocation8 + $0xf0] sm:$0xff]
    %v360 = vld [vmem:[#allocation8 + $0xf8] sm:$0xff]
    %v393 = vunpack.c.l.b16 %v329
    %v394 = vunpack.c.h.b16 %v329
    %v395 = vunpack.c.l.b16 %v330
    %v396 = vunpack.c.h.b16 %v330
    %v397 = vunpack.c.l.b16 %v331
    %v398 = vunpack.c.h.b16 %v331
    %v399 = vunpack.c.l.b16 %v332
    %v400 = vunpack.c.h.b16 %v332
    %v401 = vunpack.c.l.b16 %v333
    %v402 = vunpack.c.h.b16 %v333
    %v403 = vunpack.c.l.b16 %v334
    %v404 = vunpack.c.h.b16 %v334
    %v405 = vunpack.c.l.b16 %v335
    %v406 = vunpack.c.h.b16 %v335
    %v407 = vunpack.c.l.b16 %v336
    %v408 = vunpack.c.h.b16 %v336
    %v409 = vunpack.c.l.b16 %v337
    %v410 = vunpack.c.h.b16 %v337
    %v411 = vunpack.c.l.b16 %v338
    %v412 = vunpack.c.h.b16 %v338
    %v413 = vunpack.c.l.b16 %v339
    %v414 = vunpack.c.h.b16 %v339
    %v415 = vunpack.c.l.b16 %v340
    %v416 = vunpack.c.h.b16 %v340
    %v417 = vunpack.c.l.b16 %v341
    %v418 = vunpack.c.h.b16 %v341
    %v419 = vunpack.c.l.b16 %v342
    %v420 = vunpack.c.h.b16 %v342
    %v421 = vunpack.c.l.b16 %v343
    %v422 = vunpack.c.h.b16 %v343
    %v423 = vunpack.c.l.b16 %v344
    %v424 = vunpack.c.h.b16 %v344
    %v425 = vunpack.c.l.b16 %v345
    %v426 = vunpack.c.h.b16 %v345
    %v427 = vunpack.c.l.b16 %v346
    %v428 = vunpack.c.h.b16 %v346
    %v429 = vunpack.c.l.b16 %v347
    %v430 = vunpack.c.h.b16 %v347
    %v431 = vunpack.c.l.b16 %v348
    %v432 = vunpack.c.h.b16 %v348
    %v433 = vunpack.c.l.b16 %v349
    %v434 = vunpack.c.h.b16 %v349
    %v435 = vunpack.c.l.b16 %v350
    %v436 = vunpack.c.h.b16 %v350
    %v437 = vunpack.c.l.b16 %v351
    %v438 = vunpack.c.h.b16 %v351
    %v439 = vunpack.c.l.b16 %v352
    %v440 = vunpack.c.h.b16 %v352
    %v441 = vunpack.c.l.b16 %v353
    %v442 = vunpack.c.h.b16 %v353
    %v443 = vunpack.c.l.b16 %v354
    %v444 = vunpack.c.h.b16 %v354
    %v445 = vunpack.c.l.b16 %v355
    %v446 = vunpack.c.h.b16 %v355
    %v447 = vunpack.c.l.b16 %v356
    %v448 = vunpack.c.h.b16 %v356
    %v449 = vunpack.c.l.b16 %v357
    %v450 = vunpack.c.h.b16 %v357
    %v451 = vunpack.c.l.b16 %v358
    %v452 = vunpack.c.h.b16 %v358
    %v453 = vunpack.c.l.b16 %v359
    %v454 = vunpack.c.h.b16 %v359
    %v455 = vunpack.c.l.b16 %v360
    %v456 = vunpack.c.h.b16 %v360
    %v457 = vpack.c.b16 %v395, %v393
    %v458 = vpack.c.b16 %v396, %v394
    %v459 = vpack.c.b16 %v399, %v397
    %v460 = vpack.c.b16 %v400, %v398
    %v461 = vpack.c.b16 %v403, %v401
    %v462 = vpack.c.b16 %v404, %v402
    %v463 = vpack.c.b16 %v407, %v405
    %v464 = vpack.c.b16 %v408, %v406
    %v465 = vpack.c.b16 %v411, %v409
    %v466 = vpack.c.b16 %v412, %v410
    %v467 = vpack.c.b16 %v415, %v413
    %v468 = vpack.c.b16 %v416, %v414
    %v469 = vpack.c.b16 %v419, %v417
    %v470 = vpack.c.b16 %v420, %v418
    %v471 = vpack.c.b16 %v423, %v421
    %v472 = vpack.c.b16 %v424, %v422
    %v473 = vpack.c.b16 %v427, %v425
    %v474 = vpack.c.b16 %v428, %v426
    %v475 = vpack.c.b16 %v431, %v429
    %v476 = vpack.c.b16 %v432, %v430
    %v477 = vpack.c.b16 %v435, %v433
    %v478 = vpack.c.b16 %v436, %v434
    %v479 = vpack.c.b16 %v439, %v437
    %v480 = vpack.c.b16 %v440, %v438
    %v481 = vpack.c.b16 %v443, %v441
    %v482 = vpack.c.b16 %v444, %v442
    %v483 = vpack.c.b16 %v447, %v445
    %v484 = vpack.c.b16 %v448, %v446
    %v485 = vpack.c.b16 %v451, %v449
    %v486 = vpack.c.b16 %v452, %v450
    %v487 = vpack.c.b16 %v455, %v453
    %v488 = vpack.c.b16 %v456, %v454
    %521 = vmatprep.subr.bf16.mxu0 %v458
    %522 = vmatpush1.bf16.msra.mxu0 %v457
    %523 = vmatprep.subr.bf16.mxu0 %v460
    %524 = vmatpush1.bf16.msra.mxu0 %v459
    %525 = vmatprep.subr.bf16.mxu0 %v462
    %526 = vmatpush1.bf16.msra.mxu0 %v461
    %527 = vmatprep.subr.bf16.mxu0 %v464
    %528 = vmatpush1.bf16.msra.mxu0 %v463
    %529 = vmatprep.subr.bf16.mxu0 %v466
    %530 = vmatpush1.bf16.msra.mxu0 %v465
    %531 = vmatprep.subr.bf16.mxu0 %v468
    %532 = vmatpush1.bf16.msra.mxu0 %v467
    %533 = vmatprep.subr.bf16.mxu0 %v470
    %534 = vmatpush1.bf16.msra.mxu0 %v469
    %535 = vmatprep.subr.bf16.mxu0 %v472
    %536 = vmatpush1.bf16.msra.mxu0 %v471
    %537 = vmatprep.subr.bf16.mxu0 %v474
    %538 = vmatpush1.bf16.msra.mxu0 %v473
    %539 = vmatprep.subr.bf16.mxu0 %v476
    %540 = vmatpush1.bf16.msra.mxu0 %v475
    %541 = vmatprep.subr.bf16.mxu0 %v478
    %542 = vmatpush1.bf16.msra.mxu0 %v477
    %543 = vmatprep.subr.bf16.mxu0 %v480
    %544 = vmatpush1.bf16.msra.mxu0 %v479
    %545 = vmatprep.subr.bf16.mxu0 %v482
    %546 = vmatpush1.bf16.msra.mxu0 %v481
    %547 = vmatprep.subr.bf16.mxu0 %v484
    %548 = vmatpush1.bf16.msra.mxu0 %v483
    %549 = vmatprep.subr.bf16.mxu0 %v486
    %550 = vmatpush1.bf16.msra.mxu0 %v485
    %551 = vmatprep.subr.bf16.mxu0 %v488
    %552 = vmatpush1.bf16.msra.mxu0 %v487
    %553 = vmatprep.mubr.bf16.mxu0 %v328
    %554 = vmatmul.mubr.bf16.gmra.mrb[0].mxu0 %v327
    %v555 = vpop.f32.mrb[0].mxu0
    %v556 = vadd.f32 0.0, %v555
    %v557 = vpop.f32.mrb[0].mxu0
    %v558 = vadd.f32 0.0, %v557
    %v559 = vpop.f32.mrb[0].mxu0
    %v560 = vpop.f32.mrb[0].mxu0
    %561 = vdwg.mxu0
    %v562 = vadd.f32 %v325, %v556
    %v563 = vadd.f32 %v326, %v558
    %564 = vst [vmem:[#allocation2] sm:$0xff] %v562
    %565 = vst [vmem:[#allocation2 + $0x8] sm:$0xff] %v563
    // Predicated region
    $region38: #{tpu_custom_call.1} parent=1 // pred_check
      %p566 = pneg %p60
    $region39: #{tpu_custom_call.1} parent=1 // pred_check_branch
      %568 = sbr.rel (%p566) target = $region41
    $region40: #{tpu_custom_call.1} parent=1 // pred_region
      %v569 = vld [vmem:[#allocation2] sm:$0xff]
      %v570 = vld [vmem:[#allocation2 + $0x8] sm:$0xff]
      %v571 = vld [vmem:[%s4] sm:$0x3]
      %v573 = vlaneseq
      %v574 = vshrl.u32 %v573, 7
      %v575 = vsub.s32 0, %v574
      %v576 = vrot.slane %v571, %v575
      %v577 = vlaneseq
      %v578 = vshrl.u32 %v577, 7
      %v579 = vsub.s32 1, %v578
      %v580 = vrot.slane %v571, %v579
      %v583 = vadd.f32 %v569, %v576
      %v584 = vadd.f32 %v570, %v580
      %585 = vst [vmem:[#allocation9] sm:$0xff] %v583
      %586 = vst [vmem:[#allocation9 + $0x8] sm:$0xff] %v584
    $region41: #{tpu_custom_call.1} parent=1 // pred_fallthru
      _
    // Predicated region
    $region42: #{tpu_custom_call.1} parent=1 // pred_check
      _
    $region43: #{tpu_custom_call.1} parent=1 // pred_check_branch
      %588 = sbr.rel (0) target = $region45
    $region44: #{tpu_custom_call.1} parent=1 // pred_region
      %s590 = ssub.s32 256, 256
      %591 = vsyncadd [#allocation5], %s590
      %s593 = sshll.u32 [#allocation9], 4
      %s594 = int_to_ptr.vmem [resolvable:$true] %s593
      %596 = dma.vmem_to_hbm [thread:$0]  %s594, 256, %s5, [#allocation5]
    $region45: #{tpu_custom_call.1} parent=1 // pred_fallthru
      _
    // Predicated region
    $region46: #{tpu_custom_call.1} parent=1 // pred_check
      _
    $region47: #{tpu_custom_call.1} parent=1 // pred_check_branch
      %598 = sbr.rel (0) target = $region49
    $region48: #{tpu_custom_call.1} parent=1 // pred_region
      %599 = dma.done [#allocation5], 256
    $region49: #{tpu_custom_call.1} parent=1 // pred_fallthru
      _
    %600 = vsyncpa [#allocation4], 1
    %601 = vsyncpa [#allocation7], 1
    %602 = vsyncpa [#allocation5], 1

</llo_original>
